<compile_context>
chip_gen: v7x
topology: tpu7x:2x2x1
jax: 0.10.0
libtpu: 0.0.40
codegen_flags: <defaults>
</compile_context>

<pallas_src>
import functools

import jax
import jax.numpy as jnp
from jax.experimental import pallas as pl
from jax.experimental.pallas import tpu as pltpu

KH = KW = 4
STRIDE = 2
PAD = 1
EPS = 1e-5  # nn.InstanceNorm2d default (affine=False, biased variance)


def _down_kernel(xp_ref, wt_ref, mask_ref, o_ref, *, c_in, wp2, h_out, w_out):
    """Fused conv + instance-norm for one batch element.

    xp_ref   : [1, 4*c_in, s_pad]  stride-parity planes of the zero-padded input,
               spatial flattened as q = h*wp2 + w, channel index = (ph*2+pw)*c_in + c.
    wt_ref   : [C_out, 16*c_in]    conv weight repacked to (offset, parity, c) rows.
    mask_ref : [1, Pp_pad]         1.0 on valid lanes, 0.0 on junk column + pad lanes.
    o_ref    : [1, C_out, Pp_pad]  normalized conv output, lane-dense padded-flat layout.
    """
    pp = o_ref.shape[2]
    inv_p = 1.0 / float(h_out * w_out)

    # Single load of the parity block; build the patch as 4 lane-shifted copies
    # stacked along sublanes.  Only 4 distinct offsets exist: {0, 1, wp2, wp2+1}.
    x_all = xp_ref[0]                                              # [4*c_in, s_pad]
    patch = jnp.concatenate(
        [x_all[:, off:off + pp] for off in (0, 1, wp2, wp2 + 1)], axis=0
    )                                                              # [16*c_in, pp]

    # ONE MXU matmul: contraction over 16*c_in, f32 accumulation.
    acc = jnp.dot(wt_ref[...], patch,
                  preferred_element_type=jnp.float32)              # [C_out, pp]

    # InstanceNorm2d over the valid spatial positions (two-pass, masked).
    msk = mask_ref[...]                                            # [1, pp] f32 {0,1}
    mean = jnp.sum(acc * msk, axis=1, keepdims=True) * inv_p       # [C_out, 1]
    cen = acc - mean
    var = jnp.sum(cen * cen * msk, axis=1, keepdims=True) * inv_p  # [C_out, 1]
    o_ref[0] = (cen * jax.lax.rsqrt(var + EPS)).astype(o_ref.dtype)


@jax.jit
def down_forward(x, weight):
    """x: [B, C_in, H, W] NCHW; weight: PyTorch Conv2d weight [C_out, C_in, 4, 4]."""
    B, C_in, H, W = x.shape
    C_out = weight.shape[0]
    H_pad, W_pad = H + 2 * PAD, W + 2 * PAD
    assert H_pad % STRIDE == 0 and W_pad % STRIDE == 0, "expects even H, W"
    Hp2, Wp2 = H_pad // STRIDE, W_pad // STRIDE        # parity-plane extents
    H_out, W_out = Hp2 - 1, Wp2 - 1                    # conv output extents
    Pp = H_out * Wp2                                   # padded-flat spatial extent
    Pp_pad = ((Pp + 127) // 128) * 128                 # lane-dense output extent
    K = STRIDE * STRIDE * KH * KW // (STRIDE * STRIDE) * C_in * 4  # = 16*C_in
    K = 16 * C_in

    # ---- input prep: zero-pad + stride-parity split (space-to-depth). ~1x input
    #      bytes; no 4x im2col duplication.
    x_pad = jnp.pad(x, ((0, 0), (0, 0), (PAD, PAD), (PAD, PAD)))
    xp = x_pad.reshape(B, C_in, Hp2, STRIDE, Wp2, STRIDE)
    xp = xp.transpose(0, 3, 5, 1, 2, 4)                # [B, ph, pw, C_in, Hp2, Wp2]
    xp = xp.reshape(B, STRIDE * STRIDE * C_in, Hp2 * Wp2)
    s_flat = Hp2 * Wp2
    s_need = max(s_flat, Pp_pad + Wp2 + 1)             # headroom for largest tap offset
    s_pad = ((s_need + 127) // 128) * 128
    xp = jnp.pad(xp, ((0, 0), (0, 0), (0, s_pad - s_flat)))

    # ---- weight repacked to (offset, parity, c) row order so the conv is a
    #      single matmul: kh = 2*dh + ph, kw = 2*dw + pw,
    #      row = (dh*2+dw)*4*C_in + (ph*2+pw)*C_in + c.
    wt = weight.reshape(C_out, C_in, 2, 2, 2, 2)       # [C_out, C_in, dh, ph, dw, pw]
    wt = wt.transpose(0, 2, 4, 3, 5, 1).reshape(C_out, K).astype(x.dtype)

    # ---- stats mask: zero the per-row junk column (w == W_out) and the pad lanes.
    j = jnp.arange(Pp_pad, dtype=jnp.int32)
    mask = ((j < Pp) & (j % Wp2 < W_out)).astype(jnp.float32).reshape(1, Pp_pad)

    # ---- cost estimate + VMEM budget derived from actual block bytes.
    itemsize = x.dtype.itemsize
    flops = 2 * B * Pp_pad * K * C_out
    bytes_accessed = (xp.size * xp.dtype.itemsize
                      + wt.size * wt.dtype.itemsize
                      + mask.size * mask.dtype.itemsize
                      + B * C_out * Pp_pad * itemsize)
    in_block = 4 * C_in * s_pad * itemsize
    out_block = C_out * Pp_pad * itemsize
    resident = wt.size * wt.dtype.itemsize + mask.size * mask.dtype.itemsize
    scratch = (K + C_out) * Pp_pad * 4                 # in-kernel patch + f32 acc
    need = 2 * (in_block + out_block) + resident + scratch
    vmem_limit = int(min(max(4 * need, 8 << 20), 48 << 20))   # v7x-safe (64 MiB phys)

    kernel = functools.partial(_down_kernel, c_in=C_in, wp2=Wp2,
                               h_out=H_out, w_out=W_out)

    out_pp = pl.pallas_call(
        kernel,
        out_shape=jax.ShapeDtypeStruct((B, C_out, Pp_pad), x.dtype),
        grid_spec=pltpu.PrefetchScalarGridSpec(
            num_scalar_prefetch=0,
            grid=(B,),
            in_specs=[
                pl.BlockSpec((1, STRIDE * STRIDE * C_in, s_pad), lambda b: (b, 0, 0)),
                pl.BlockSpec((C_out, K), lambda b: (0, 0)),
                pl.BlockSpec((1, Pp_pad), lambda b: (0, 0)),
            ],
            out_specs=pl.BlockSpec((1, C_out, Pp_pad), lambda b: (b, 0, 0)),
        ),
        compiler_params=pltpu.CompilerParams(
            dimension_semantics=("parallel",),
            vmem_limit_bytes=vmem_limit,
        ),
        cost_estimate=pl.CostEstimate(
            flops=flops, transcendentals=0, bytes_accessed=bytes_accessed),
    )(xp, wt, mask)                                    # [B, C_out, Pp_pad]

    # Padded-flat -> NCHW: drop pad lanes + junk column; no transpose round-trip.
    return out_pp[:, :, :Pp].reshape(B, C_out, H_out, Wp2)[:, :, :, :W_out]


def down_reference(x, weight):
    """Plain-JAX reference: conv2d(k=4,s=2,p=1,bias=False) + InstanceNorm2d."""
    y = jax.lax.conv_general_dilated(
        x.astype(jnp.float32), weight.astype(jnp.float32),
        window_strides=(STRIDE, STRIDE), padding=((PAD, PAD), (PAD, PAD)),
        dimension_numbers=("NCHW", "OIHW", "NCHW"),
    )
    mean = jnp.mean(y, axis=(2, 3), keepdims=True)
    var = jnp.mean((y - mean) ** 2, axis=(2, 3), keepdims=True)
    return (y - mean) * jax.lax.rsqrt(var + EPS)


if __name__ == "__main__":
    key = jax.random.PRNGKey(0)
    k_x, k_w = jax.random.split(key)

    B, C_in, H, W = 2, 4, 16, 16
    C_out = 8

    x = jax.random.normal(k_x, (B, C_in, H, W), dtype=jnp.float32)
    fan_in = C_in * KH * KW
    weight = jax.random.normal(k_w, (C_out, C_in, KH, KW), dtype=jnp.float32) / jnp.sqrt(fan_in)

    out = jax.block_until_ready(down_forward(x, weight))
    ref = jax.block_until_ready(down_reference(x, weight))

    assert out.shape == (B, C_out, H // 2, W // 2), out.shape
    assert jnp.allclose(out, ref, atol=1e-4, rtol=1e-4), float(jnp.max(jnp.abs(out - ref)))

    print("KERNEL_OK")
</pallas_src>

<mosaic_0001>
module attributes {stable_mosaic.version = 11 : i64} {
  func.func @_down_kernel(%arg0: i32, %arg1: memref<1x16x256xf32, #tpu.memory_space<vmem>>, %arg2: memref<8x64xf32, #tpu.memory_space<vmem>>, %arg3: memref<1x128xf32, #tpu.memory_space<vmem>>, %arg4: memref<1x8x128xf32, #tpu.memory_space<vmem>>) attributes {dimension_semantics = [#tpu.dimension_semantics<parallel>], iteration_bounds = array<i64: 2>, scalar_prefetch = 0 : i64, scratch_operands = 0 : i64, tpu.core_type = #tpu.core_type<tc>, window_params = [{transform_indices = @transform_0, window_bounds = array<i64: 1, 16, 256>}, {pipeline_mode = #tpu.pipeline_mode<synchronous>, transform_indices = @transform_1, window_bounds = array<i64: 8, 64>}, {pipeline_mode = #tpu.pipeline_mode<synchronous>, transform_indices = @transform_2, window_bounds = array<i64: 1, 128>}, {transform_indices = @transform_3, window_bounds = array<i64: 1, 8, 128>}]} {
    %c0 = arith.constant 0 : index
    %c0_0 = arith.constant 0 : index
    %c0_1 = arith.constant 0 : index
    %0 = vector.load %arg1[%c0, %c0_0, %c0_1] : memref<1x16x256xf32, #tpu.memory_space<vmem>>, vector<1x16x256xf32>
    %1 = vector.shape_cast %0 : vector<1x16x256xf32> to vector<16x256xf32>
    %2 = vector.extract_strided_slice %1 {offsets = [0, 0], sizes = [16, 128], strides = [1, 1]} : vector<16x256xf32> to vector<16x128xf32>
    %3 = vector.extract_strided_slice %1 {offsets = [0, 1], sizes = [16, 128], strides = [1, 1]} : vector<16x256xf32> to vector<16x128xf32>
    %4 = vector.extract_strided_slice %1 {offsets = [0, 9], sizes = [16, 128], strides = [1, 1]} : vector<16x256xf32> to vector<16x128xf32>
    %5 = vector.extract_strided_slice %1 {offsets = [0, 10], sizes = [16, 128], strides = [1, 1]} : vector<16x256xf32> to vector<16x128xf32>
    %6 = tpu.concatenate %2, %3, %4, %5 in 0 : vector<16x128xf32>, vector<16x128xf32>, vector<16x128xf32>, vector<16x128xf32> -> vector<64x128xf32>
    %c0_2 = arith.constant 0 : index
    %c0_3 = arith.constant 0 : index
    %7 = vector.load %arg2[%c0_2, %c0_3] : memref<8x64xf32, #tpu.memory_space<vmem>>, vector<8x64xf32>
    %cst = arith.constant dense<0.000000e+00> : vector<8x128xf32>
    %8 = tpu.matmul %7, %6, %cst {dimension_numbers = #tpu.dot_dimension_numbers<[1], [0], [0], [1], [0, 0, 1, 1], [], []>} : vector<8x64xf32>, vector<64x128xf32>, vector<8x128xf32> -> vector<8x128xf32>
    %c0_4 = arith.constant 0 : index
    %c0_5 = arith.constant 0 : index
    %9 = vector.load %arg3[%c0_4, %c0_5] : memref<1x128xf32, #tpu.memory_space<vmem>>, vector<1x128xf32>
    %10 = vector.broadcast %9 : vector<1x128xf32> to vector<8x128xf32>
    %11 = arith.mulf %8, %10 : vector<8x128xf32>
    %cst_6 = arith.constant dense<0.000000e+00> : vector<8xf32>
    %12 = vector.multi_reduction <add>, %11, %cst_6 [1] : vector<8x128xf32> to vector<8xf32>
    %13 = vector.shape_cast %12 : vector<8xf32> to vector<8x1xf32>
    %cst_7 = arith.constant 1.562500e-02 : f32
    %14 = vector.broadcast %cst_7 : f32 to vector<8x1xf32>
    %15 = arith.mulf %13, %14 : vector<8x1xf32>
    %16 = vector.broadcast %15 : vector<8x1xf32> to vector<8x128xf32>
    %17 = arith.subf %8, %16 : vector<8x128xf32>
    %18 = arith.mulf %17, %17 : vector<8x128xf32>
    %19 = vector.broadcast %9 : vector<1x128xf32> to vector<8x128xf32>
    %20 = arith.mulf %18, %19 : vector<8x128xf32>
    %cst_8 = arith.constant dense<0.000000e+00> : vector<8xf32>
    %21 = vector.multi_reduction <add>, %20, %cst_8 [1] : vector<8x128xf32> to vector<8xf32>
    %22 = vector.shape_cast %21 : vector<8xf32> to vector<8x1xf32>
    %cst_9 = arith.constant 1.562500e-02 : f32
    %23 = vector.broadcast %cst_9 : f32 to vector<8x1xf32>
    %24 = arith.mulf %22, %23 : vector<8x1xf32>
    %cst_10 = arith.constant 9.99999974E-6 : f32
    %25 = vector.broadcast %cst_10 : f32 to vector<8x1xf32>
    %26 = arith.addf %24, %25 : vector<8x1xf32>
    %27 = math.rsqrt %26 : vector<8x1xf32>
    %28 = vector.broadcast %27 : vector<8x1xf32> to vector<8x128xf32>
    %29 = arith.mulf %17, %28 : vector<8x128xf32>
    %c0_11 = arith.constant 0 : index
    %c0_12 = arith.constant 0 : index
    %c0_13 = arith.constant 0 : index
    %30 = vector.load %arg4[%c0_11, %c0_12, %c0_13] : memref<1x8x128xf32, #tpu.memory_space<vmem>>, vector<1x8x128xf32>
    %31 = vector.shape_cast %30 : vector<1x8x128xf32> to vector<8x128xf32>
    %32 = vector.shape_cast %29 : vector<8x128xf32> to vector<1x8x128xf32>
    tpu.vector_store %arg4[%c0_11, %c0_12, %c0_13], %32 {strides = array<i32>} : memref<1x8x128xf32, #tpu.memory_space<vmem>>, vector<1x8x128xf32>,
    return
  }
  func.func @transform_0(%arg0: i32) -> (i32, i32, i32) {
    %c0_i32 = arith.constant 0 : i32
    %c0_i32_0 = arith.constant 0 : i32
    %c0_i32_1 = arith.constant 0 : i32
    return %arg0, %c0_i32, %c0_i32_0 : i32, i32, i32
  }
  func.func @transform_1(%arg0: i32) -> (i32, i32) {
    %c0_i32 = arith.constant 0 : i32
    %c0_i32_0 = arith.constant 0 : i32
    %c0_i32_1 = arith.constant 0 : i32
    return %c0_i32, %c0_i32_0 : i32, i32
  }
  func.func @transform_2(%arg0: i32) -> (i32, i32) {
    %c0_i32 = arith.constant 0 : i32
    %c0_i32_0 = arith.constant 0 : i32
    %c0_i32_1 = arith.constant 0 : i32
    return %c0_i32, %c0_i32_0 : i32, i32
  }
  func.func @transform_3(%arg0: i32) -> (i32, i32, i32) {
    %c0_i32 = arith.constant 0 : i32
    %c0_i32_0 = arith.constant 0 : i32
    %c0_i32_1 = arith.constant 0 : i32
    return %arg0, %c0_i32, %c0_i32_0 : i32, i32, i32
  }
}

</mosaic_0001>

<llo_original>
// kernel: down_forward.1
$region0: #{down_forward.1}
  #allocation0 [shape = 'u32[]', space=smem, size = 0x4, offset = 0x4, fixed_abs, tag = 'smem constant byte address 0x4 - core index']
  #allocation1 [shape = 'u32[144,128]{1,0:T(1,128)}', space=vmem, size = 0x12000, scoped, tag = 'internal scratch']
  %s0 = inlined_call_operand.vmem [shape: f32[2,16,256], index: 0, kind: input, shape index: {}]
  %s1 = inlined_call_operand.vmem [shape: f32[8,64], index: 1, kind: input, shape index: {}]
  %s2 = inlined_call_operand.vmem [shape: f32[1,128], index: 2, kind: input, shape index: {}]
  %s3 = inlined_call_operand.vmem [shape: f32[2,8,128], index: 3, kind: output, shape index: {}]
  %s4 = sld [smem:[#allocation0]]
  $region45: #{down_forward.1} parent=0
    _
  %s6 = ssub.s32 1, %s4
  %s7 = scalar_select 0, %s6, %s4
  loop: start=0, step=1, limit=4
  $region2: #{down_forward.1} parent=0 // loop_pre_header
    _
  $region3: #{down_forward.1} parent=0 // loop_header
    %s9 = sphi 0, %s13
    %p10 = scmp.ge.s32.totalorder %s9, 4
    %s19 = sphi 0, %s21
    %s22 = sphi 0, %s19
    %s23 = sphi 0, %s22
    %s39 = sphi 0, %s23
    %s43 = sphi 0, %s43
    %s45 = sphi 0, %s43
    %s46 = sphi 0, %s45
    %s60 = sphi 0, %s46
    %s64 = sphi 0, %s64
    %s66 = sphi 0, %s64
    %s67 = sphi 0, %s66
    %s81 = sphi 0, %s67
    %s87 = sphi 0, %s89
    %s90 = sphi 0, %s87
    %s91 = sphi 0, %s90
    %s107 = sphi 0, %s91
  $region4: #{down_forward.1} parent=0 // loop_header_branch
    %12 = sbr.rel (%p10) target = $region8
  $region5: #{down_forward.1} parent=0 // loop_body
    %s14 = ssub.s32 %s9, 1
    %s15 = ssub.s32 %s9, 2
    %s16 = sadd.s32 %s9, 1
    %s17 = ssub.s32 %s9, %s16
    %p18 = scmp.eq.s32.totalorder %s17, 0
    %s20 = sadd.s32 %s19, 1
    %s21 = scalar_select %p18, %s19, %s20
    %p24 = pneg %p18
    %p25 = scmp.eq.s32.totalorder %s9, 1
    %p26 = por %p24, %p25
    %p27 = scmp.ne.s32.totalorder %s19, %s22
    %p28 = scmp.eq.s32.totalorder %s9, 0
    %p29 = por %p27, %p28
    %p30 = scmp.ne.s32.totalorder %s19, %s22
    %p31 = scmp.eq.s32.totalorder %s14, 1
    %p32 = por %p30, %p31
    %p33 = scmp.ne.s32.totalorder %s22, %s23
    %p34 = scmp.eq.s32.totalorder %s14, 0
    %p35 = por %p33, %p34
    %p36 = scmp.ne.s32.totalorder %s22, %s23
    %p37 = scmp.eq.s32.totalorder %s15, 1
    %p38 = por %p36, %p37
    %p40 = scmp.ne.s32.totalorder %s23, %s39
    %p41 = scmp.eq.s32.totalorder %s15, 0
    %p42 = por %p40, %p41
    %s44 = sadd.s32 %s43, 1
    %p47 = scmp.eq.s32.totalorder %s9, 1
    %p48 = scmp.ne.s32.totalorder %s43, %s45
    %p49 = scmp.eq.s32.totalorder %s9, 0
    %p50 = por %p48, %p49
    %p51 = scmp.ne.s32.totalorder %s43, %s45
    %p52 = scmp.eq.s32.totalorder %s14, 1
    %p53 = por %p51, %p52
    %p54 = scmp.ne.s32.totalorder %s45, %s46
    %p55 = scmp.eq.s32.totalorder %s14, 0
    %p56 = por %p54, %p55
    %p57 = scmp.ne.s32.totalorder %s45, %s46
    %p58 = scmp.eq.s32.totalorder %s15, 1
    %p59 = por %p57, %p58
    %p61 = scmp.ne.s32.totalorder %s46, %s60
    %p62 = scmp.eq.s32.totalorder %s15, 0
    %p63 = por %p61, %p62
    %s65 = sadd.s32 %s64, 1
    %p68 = scmp.eq.s32.totalorder %s9, 1
    %p69 = scmp.ne.s32.totalorder %s64, %s66
    %p70 = scmp.eq.s32.totalorder %s9, 0
    %p71 = por %p69, %p70
    %p72 = scmp.ne.s32.totalorder %s64, %s66
    %p73 = scmp.eq.s32.totalorder %s14, 1
    %p74 = por %p72, %p73
    %p75 = scmp.ne.s32.totalorder %s66, %s67
    %p76 = scmp.eq.s32.totalorder %s14, 0
    %p77 = por %p75, %p76
    %p78 = scmp.ne.s32.totalorder %s66, %s67
    %p79 = scmp.eq.s32.totalorder %s15, 1
    %p80 = por %p78, %p79
    %p82 = scmp.ne.s32.totalorder %s67, %s81
    %p83 = scmp.eq.s32.totalorder %s15, 0
    %p84 = por %p82, %p83
    %s85 = ssub.s32 %s9, %s16
    %p86 = scmp.eq.s32.totalorder %s85, 0
    %s88 = sadd.s32 %s87, 1
    %s89 = scalar_select %p86, %s87, %s88
    %p92 = pneg %p86
    %p93 = scmp.eq.s32.totalorder %s9, 1
    %p94 = por %p92, %p93
    %p95 = scmp.ne.s32.totalorder %s87, %s90
    %p96 = scmp.eq.s32.totalorder %s9, 0
    %p97 = por %p95, %p96
    %p98 = scmp.ne.s32.totalorder %s87, %s90
    %p99 = scmp.eq.s32.totalorder %s14, 1
    %p100 = por %p98, %p99
    %p101 = scmp.ne.s32.totalorder %s90, %s91
    %p102 = scmp.eq.s32.totalorder %s14, 0
    %p103 = por %p101, %p102
    %p104 = scmp.ne.s32.totalorder %s90, %s91
    %p105 = scmp.eq.s32.totalorder %s15, 1
    %p106 = por %p104, %p105
    %p108 = scmp.ne.s32.totalorder %s91, %s107
    %p109 = scmp.eq.s32.totalorder %s15, 0
    %p110 = por %p108, %p109
    %p111 = scmp.le.s32.totalorder 1, %s9
    %p112 = scmp.lt.s32.totalorder %s9, 3
    %p113 = pnand %p111, %p112
    %p114 = pneg %p113
    // Predicated region
    $region9: #{down_forward.1} parent=5 // pred_check
      _
    $region10: #{down_forward.1} parent=5 // pred_check_branch
      %116 = sbr.rel (%p113) target = $region12
    $region11: #{down_forward.1} parent=5 // pred_region
      %s117 = ssub.s32 %s9, 1
      // Predicated region
      $region13: #{down_forward.1} parent=11 // pred_check
        %p118 = pneg %p56
      $region14: #{down_forward.1} parent=11 // pred_check_branch
        %120 = sbr.rel (%p118) target = $region16
      $region15: #{down_forward.1} parent=11 // pred_region
        _
      $region16: #{down_forward.1} parent=11 // pred_fallthru
        _
      // Predicated region
      $region17: #{down_forward.1} parent=11 // pred_check
        %p121 = pneg %p77
      $region18: #{down_forward.1} parent=11 // pred_check_branch
        %123 = sbr.rel (%p121) target = $region20
      $region19: #{down_forward.1} parent=11 // pred_region
        _
      $region20: #{down_forward.1} parent=11 // pred_fallthru
        _
    $region12: #{down_forward.1} parent=5 // pred_fallthru
      _
    %p124 = scmp.lt.s32.totalorder %s9, 2
    // Predicated region
    $region21: #{down_forward.1} parent=5 // pred_check
      %p125 = pneg %p124
    $region22: #{down_forward.1} parent=5 // pred_check_branch
      %127 = sbr.rel (%p125) target = $region24
    $region23: #{down_forward.1} parent=5 // pred_region
      // Predicated region
      $region25: #{down_forward.1} parent=23 // pred_check
        %p128 = pneg %p29
      $region26: #{down_forward.1} parent=23 // pred_check_branch
        %130 = sbr.rel (%p128) target = $region28
      $region27: #{down_forward.1} parent=23 // pred_region
        %p131 = scmp.lt.s32.totalorder %s9, 1
        %s132 = scalar_select %p131, %s9, 1
        %s133 = smul.addr %s132, 4
        %s134 = smul.addr %s133, 8
        %s135 = scalar_lea.vmem %s0, %s134
      $region28: #{down_forward.1} parent=23 // pred_fallthru
        _
    $region24: #{down_forward.1} parent=5 // pred_fallthru
      _
    %p136 = scmp.le.s32.totalorder 1, %s9
    %p137 = scmp.lt.s32.totalorder %s9, 3
    %p138 = pnand %p136, %p137
    %p139 = pneg %p138
    // Predicated region
    $region29: #{down_forward.1} parent=5 // pred_check
      _
    $region30: #{down_forward.1} parent=5 // pred_check_branch
      %141 = sbr.rel (%p138) target = $region32
    $region31: #{down_forward.1} parent=5 // pred_region
      %s142 = ssub.s32 %s9, 1
      %p143 = scmp.lt.s32.totalorder %s14, 1
      %s144 = scalar_select %p143, %s14, 1
      %s145 = smul.addr %s144, 4
      %s146 = smul.addr %s145, 8
      %s147 = scalar_lea.vmem %s0, %s146
      %p148 = pneg %p35
      %p149 = pneg %p32
      %p150 = pneg %p56
      %p151 = pneg %p53
      %p152 = pneg %p77
      %p153 = pneg %p74
      %p154 = pneg %p103
      %p155 = pneg %p100
      %p156 = scmp.lt.s32.totalorder %s14, 1
      %s157 = scalar_select %p156, %s14, 1
      %s158 = smul.addr %s157, 8
      %s159 = scalar_lea.vmem %s3, %s158
      %p160 = scmp.lt.s32.totalorder %s14, 1
      %s161 = scalar_select %p160, %s14, 1
      %s162 = smul.addr %s161, 4
      %s163 = smul.addr %s162, 8
      %s164 = scalar_lea.vmem %s0, %s163
      %p165 = scmp.lt.s32.totalorder %s14, 1
      %s166 = scalar_select %p165, %s14, 1
      %s167 = smul.addr %s166, 8
      %s168 = scalar_lea.vmem %s3, %s167
      %v169 = vld [vmem:[%s164] sm:$0xff]
      %v170 = vld [vmem:[%s164 + $0x8] sm:$0xff]
      %v171 = vld [vmem:[%s164 + $0x10] sm:$0xff]
      %v172 = vld [vmem:[%s164 + $0x18] sm:$0xff]
      %177 = vrot.lane.b32.xlu0 %v169, 127
      %v178 = vpop.permute.xlu0 %177
      %179 = vrot.lane.b32.xlu0 %v170, 127
      %v180 = vpop.permute.xlu0 %179
      %181 = vrot.lane.b32.xlu0 %v171, 127
      %v182 = vpop.permute.xlu0 %181
      %183 = vrot.lane.b32.xlu0 %v172, 127
      %v184 = vpop.permute.xlu0 %183
      %vm185 = vcmask 1039360
      %v186 = vsel %vm185, %v178, %v180
      %v187 = vsel %vm185, %v182, %v184
      %190 = vrot.lane.b32.xlu0 %v169, 119
      %v191 = vpop.permute.xlu0 %190
      %192 = vrot.lane.b32.xlu0 %v170, 119
      %v193 = vpop.permute.xlu0 %192
      %194 = vrot.lane.b32.xlu0 %v171, 119
      %v195 = vpop.permute.xlu0 %194
      %196 = vrot.lane.b32.xlu0 %v172, 119
      %v197 = vpop.permute.xlu0 %196
      %vm198 = vcmask 973824
      %v199 = vsel %vm198, %v191, %v193
      %v200 = vsel %vm198, %v195, %v197
      %203 = vrot.lane.b32.xlu0 %v169, 118
      %v204 = vpop.permute.xlu0 %203
      %205 = vrot.lane.b32.xlu0 %v170, 118
      %v206 = vpop.permute.xlu0 %205
      %207 = vrot.lane.b32.xlu0 %v171, 118
      %v208 = vpop.permute.xlu0 %207
      %209 = vrot.lane.b32.xlu0 %v172, 118
      %v210 = vpop.permute.xlu0 %209
      %vm211 = vcmask 965632
      %v212 = vsel %vm211, %v204, %v206
      %v213 = vsel %vm211, %v208, %v210
      %v216 = vld [vmem:[%s1] sm:$0xff]
      %vm217 = vcmask 523264
      %v219 = vsel %vm217, %v216, 0
      %221 = vmatprep.subr.mxu0 0.0
      %222 = vmatpush1.msra.mxu0 %v169
      %223 = vmatprep.subr.mxu0 0.0
      %224 = vmatpush1.msra.mxu0 %v171
      %225 = vmatprep.subr.mxu0 0.0
      %226 = vmatpush1.msra.mxu0 %v186
      %227 = vmatprep.subr.mxu0 0.0
      %228 = vmatpush1.msra.mxu0 %v187
      %229 = vmatprep.subr.mxu0 0.0
      %230 = vmatpush1.msra.mxu0 %v199
      %231 = vmatprep.subr.mxu0 0.0
      %232 = vmatpush1.msra.mxu0 %v200
      %233 = vmatprep.subr.mxu0 0.0
      %234 = vmatpush1.msra.mxu0 %v212
      %235 = vmatprep.subr.mxu0 0.0
      %236 = vmatpush1.msra.mxu0 %v213
      %237 = vmatprep.subr.mxu0 0.0
      %238 = vmatpush1.msra.mxu0 0.0
      %239 = vmatprep.subr.mxu0 0.0
      %240 = vmatpush1.msra.mxu0 0.0
      %241 = vmatprep.subr.mxu0 0.0
      %242 = vmatpush1.msra.mxu0 0.0
      %243 = vmatprep.subr.mxu0 0.0
      %244 = vmatpush1.msra.mxu0 0.0
      %245 = vmatprep.subr.mxu0 0.0
      %246 = vmatpush1.msra.mxu0 0.0
      %247 = vmatprep.subr.mxu0 0.0
      %248 = vmatpush1.msra.mxu0 0.0
      %249 = vmatprep.subr.mxu0 0.0
      %250 = vmatpush1.msra.mxu0 0.0
      %251 = vmatprep.subr.mxu0 0.0
      %252 = vmatpush1.msra.mxu0 0.0
      %253 = vmatprep.subr.mxu0 0.0
      %254 = vmatpush1.msra.mxu0 0.0
      %255 = vmatprep.subr.mxu0 0.0
      %256 = vmatpush1.msra.mxu0 0.0
      %257 = vmatprep.subr.mxu0 0.0
      %258 = vmatpush1.msra.mxu0 0.0
      %259 = vmatprep.subr.mxu0 0.0
      %260 = vmatpush1.msra.mxu0 0.0
      %261 = vmatprep.subr.mxu0 0.0
      %262 = vmatpush1.msra.mxu0 0.0
      %263 = vmatprep.subr.mxu0 0.0
      %264 = vmatpush1.msra.mxu0 0.0
      %265 = vmatprep.subr.mxu0 0.0
      %266 = vmatpush1.msra.mxu0 0.0
      %267 = vmatprep.subr.mxu0 0.0
      %268 = vmatpush1.msra.mxu0 0.0
      %269 = vmatprep.subr.mxu0 0.0
      %270 = vmatpush1.msra.mxu0 0.0
      %271 = vmatprep.subr.mxu0 0.0
      %272 = vmatpush1.msra.mxu0 0.0
      %273 = vmatprep.subr.mxu0 0.0
      %274 = vmatpush1.msra.mxu0 0.0
      %275 = vmatprep.subr.mxu0 0.0
      %276 = vmatpush1.msra.mxu0 0.0
      %277 = vmatprep.subr.mxu0 0.0
      %278 = vmatpush1.msra.mxu0 0.0
      %279 = vmatprep.subr.mxu0 0.0
      %280 = vmatpush1.msra.mxu0 0.0
      %281 = vmatprep.subr.mxu0 0.0
      %282 = vmatpush1.msra.mxu0 0.0
      %283 = vmatprep.subr.mxu0 0.0
      %284 = vmatpush1.msra.mxu0 0.0
      %285 = vmatprep.mubr.f32.mxu0 0.0
      %286 = vmatmul.mubr.f32.gmra.mrb[0].mxu0 %v219
      %v287 = vpop.f32.mrb[0].mxu0
      %v288 = vadd.f32 0.0, %v287
      %v289 = vpop.f32.mrb[0].mxu0
      %290 = vdwg.mxu0
      %v291 = vld [vmem:[%s2] sm:$0x1]
      %v293 = vlaneseq
      %v294 = vshrl.u32 %v293, 7
      %v295 = vsub.s32 0, %v294
      %v296 = vrot.slane %v291, %v295
      %v298 = vmul.f32 %v288, %v296
      %299 = vadd.xlane.f32.xlu0 %v298
      %v300 = vpop.xlane.xlu0 %299
      %v301 = vmul.f32 %v300, 0.015625
      %v302 = vsub.f32 %v288, %v301
      %v303 = vmul.f32 %v302, %v302
      %v304 = vmul.f32 %v303, %v296
      %305 = vadd.xlane.f32.xlu0 %v304
      %v306 = vpop.xlane.xlu0 %305
      %v307 = vmul.f32 %v306, 0.015625
      %v308 = vadd.f32 %v307, 1e-05
      %v309 = vrsqrt.pop %v308
      %v310 = vmul.f32 %v302, %v309
      %311 = vst [vmem:[%s168] sm:$0xff] %v310
      %p312 = scmp.lt.s32.totalorder %s14, 1
      %s313 = scalar_select %p312, %s14, 1
      %s314 = smul.addr %s313, 8
      %s315 = scalar_lea.vmem %s3, %s314
      // Predicated region
      $region33: #{down_forward.1} parent=31 // pred_check
        %p316 = pneg %p100
      $region34: #{down_forward.1} parent=31 // pred_check_branch
        %318 = sbr.rel (%p316) target = $region36
      $region35: #{down_forward.1} parent=31 // pred_region
        _
      $region36: #{down_forward.1} parent=31 // pred_fallthru
        _
    $region32: #{down_forward.1} parent=5 // pred_fallthru
      _
    %p319 = scmp.le.s32.totalorder 2, %s9
    // Predicated region
    $region37: #{down_forward.1} parent=5 // pred_check
      %p320 = pneg %p319
    $region38: #{down_forward.1} parent=5 // pred_check_branch
      %322 = sbr.rel (%p320) target = $region40
    $region39: #{down_forward.1} parent=5 // pred_region
      %s323 = ssub.s32 %s9, 2
      // Predicated region
      $region41: #{down_forward.1} parent=39 // pred_check
        %p324 = pneg %p106
      $region42: #{down_forward.1} parent=39 // pred_check_branch
        %326 = sbr.rel (%p324) target = $region44
      $region43: #{down_forward.1} parent=39 // pred_region
        %p327 = scmp.lt.s32.totalorder %s15, 1
        %s328 = scalar_select %p327, %s15, 1
        %s329 = smul.addr %s328, 8
        %s330 = scalar_lea.vmem %s3, %s329
      $region44: #{down_forward.1} parent=39 // pred_fallthru
        _
    $region40: #{down_forward.1} parent=5 // pred_fallthru
      _
  $region6: #{down_forward.1} parent=0 // loop_footer
    %s13 = sadd.s32 1, %s9
  $region7: #{down_forward.1} parent=0 // loop_footer_branch
    %8 = sbr.rel target = $region3
  $region8: #{down_forward.1} parent=0 // loop_exit
    _

</llo_original>
